<compile_context>
chip_gen: v6e
topology: v6e:2x2x1
jax: 0.10.0
libtpu: 0.0.40
codegen_flags: <defaults>
</compile_context>

<pallas_src>
import functools

import jax
import jax.numpy as jnp
from jax import lax
from jax.experimental import pallas as pl
from jax.experimental.pallas import tpu as pltpu


def _gaussian_kernel(params_ref, out_ref, *, ks, n_channels):
    # params_ref: (2, C, 2) f32 in SMEM; [0] = centers (cx, cy), [1] = sigmas (sx, sy)
    # out_ref:    (C, 1, ks, ks) f32 in VMEM (final module output layout)

    # In-kernel meshgrid(linspace(-1,1,ks), linspace(-1,1,ks), indexing='ij'):
    #   x[i, j] = -1 + step * i   (varies along dim 0)
    #   y[i, j] = -1 + step * j   (varies along dim 1)
    step = 2.0 / (ks - 1)
    ii = lax.broadcasted_iota(jnp.int32, (ks, ks), 0).astype(jnp.float32)
    jj = lax.broadcasted_iota(jnp.int32, (ks, ks), 1).astype(jnp.float32)
    x = -1.0 + step * ii
    y = -1.0 + step * jj

    # Static unroll over channels (C is tiny and static).  Scalar params come
    # from SMEM; vector work per channel is a single (ks, ks) tile.
    # TODO(synk): for large n_channels, vectorize the channel dim (sublane-packed
    # blocks, multiple of 8) and add a "parallel" channel grid axis so v7x's two
    # TensorCores split the work; only worth it once per-TC work exceeds the
    # ~0.35 us/step pipeline overhead.
    for c in range(n_channels):
        cx = params_ref[0, c, 0]
        cy = params_ref[0, c, 1]
        sx = params_ref[1, c, 0]
        sy = params_ref[1, c, 1]

        # Negation folded into the per-channel coefficients (scalar math).
        neg_inv_2sx2 = -1.0 / (2.0 * sx * sx)
        neg_inv_2sy2 = -1.0 / (2.0 * sy * sy)

        g = jnp.exp((y - cy) ** 2 * neg_inv_2sy2 + (x - cx) ** 2 * neg_inv_2sx2)

        # Exact normalization (approx reciprocal would exceed 1e-5 tolerance).
        denom = jnp.sum(g)
        out_ref[c, 0] = g * (1.0 / denom)


def gaussian_maker_forward(gauss_params, kernelsize):
    """gauss_params: (2, C, 2) f32 (the torch module's parameter tensor).
    Returns (C, 1, kernelsize, kernelsize) f32, matching the PyTorch module.
    The entire forward is a single pallas_call (no wrapper glue ops)."""
    n_channels = gauss_params.shape[1]
    ks = kernelsize

    # TODO(synk): if many gaussian_maker instances run per step with the same
    # static ks, batch their parameter sets into one (2, B*C, 2) call to
    # amortize the per-call launch/DMA overhead, which dominates at this size.
    return pl.pallas_call(
        functools.partial(_gaussian_kernel, ks=ks, n_channels=n_channels),
        out_shape=jax.ShapeDtypeStruct((n_channels, 1, ks, ks), jnp.float32),
        in_specs=[pl.BlockSpec(memory_space=pltpu.MemorySpace.SMEM)],
        out_specs=pl.BlockSpec(memory_space=pltpu.MemorySpace.VMEM),
        cost_estimate=pl.CostEstimate(
            flops=8 * n_channels * ks * ks,
            transcendentals=n_channels * ks * ks,
            bytes_accessed=4 * (2 * n_channels * 2 + n_channels * ks * ks),
        ),
    )(gauss_params)


def _reference_forward(gauss_params, x_grid, y_grid):
    centers = gauss_params[0]
    sigmas = gauss_params[1]
    g = jnp.exp(-(
        (y_grid[None] - centers[:, 1][:, None, None]) ** 2
        / (2.0 * sigmas[:, 1][:, None, None] ** 2)
        + (x_grid[None] - centers[:, 0][:, None, None]) ** 2
        / (2.0 * sigmas[:, 0][:, None, None] ** 2)
    ))[:, None]
    return g / g.sum(axis=(2, 3))[:, :, None, None]


if __name__ == "__main__":
    kernelsize = 9
    n_channels = 3

    # Deterministic parameter init matching the module's __init__
    # (centers = 0, sigmas = 0.1), plus a small deterministic perturbation
    # from PRNGKey(0) so per-channel scalar broadcasting is exercised.
    key = jax.random.PRNGKey(0)
    k_c, k_s = jax.random.split(key)
    centers = jnp.zeros((n_channels, 2), jnp.float32) \
        + 0.2 * jax.random.normal(k_c, (n_channels, 2), jnp.float32)
    sigmas = jnp.full((n_channels, 2), 0.1, jnp.float32) \
        + 0.05 * jax.random.uniform(k_s, (n_channels, 2), jnp.float32)
    gauss_params = jnp.stack((centers, sigmas), axis=0)   # (2, C, 2)

    out = gaussian_maker_forward(gauss_params, kernelsize)
    out = jax.block_until_ready(out)

    # Reference uses the explicit linspace/meshgrid grids (torch indexing='ij').
    xx = jnp.linspace(-1.0, 1.0, kernelsize, dtype=jnp.float32)
    yy = jnp.linspace(-1.0, 1.0, kernelsize, dtype=jnp.float32)
    x_grid, y_grid = jnp.meshgrid(xx, yy, indexing="ij")
    ref = _reference_forward(gauss_params, x_grid, y_grid)

    assert out.shape == (n_channels, 1, kernelsize, kernelsize)
    assert jnp.allclose(out, ref, atol=1e-5, rtol=1e-5)
    # Normalization check: each channel sums to 1.
    assert jnp.allclose(out.sum(axis=(2, 3)), 1.0, atol=1e-5)

    print("KERNEL_OK")
</pallas_src>

<mosaic_0001>
module attributes {stable_mosaic.version = 11 : i64} {
  func.func @_gaussian_kernel(%arg0: memref<2x3x2xf32, #tpu.memory_space<smem>>, %arg1: memref<3x1x9x9xf32, #tpu.memory_space<vmem>>) attributes {dimension_semantics = [], scalar_prefetch = 0 : i64, scratch_operands = 0 : i64, tpu.core_type = #tpu.core_type<tc>} {
    %0 = tpu.iota {dimensions = array<i32: 0>} : vector<9x9xi32>
    %1 = arith.sitofp %0 : vector<9x9xi32> to vector<9x9xf32>
    %2 = tpu.iota {dimensions = array<i32: 1>} : vector<9x9xi32>
    %3 = arith.sitofp %2 : vector<9x9xi32> to vector<9x9xf32>
    %cst = arith.constant 2.500000e-01 : f32
    %4 = vector.broadcast %cst : f32 to vector<9x9xf32>
    %5 = arith.mulf %4, %1 : vector<9x9xf32>
    %cst_0 = arith.constant -1.000000e+00 : f32
    %6 = vector.broadcast %cst_0 : f32 to vector<9x9xf32>
    %7 = arith.addf %6, %5 : vector<9x9xf32>
    %cst_1 = arith.constant 2.500000e-01 : f32
    %8 = vector.broadcast %cst_1 : f32 to vector<9x9xf32>
    %9 = arith.mulf %8, %3 : vector<9x9xf32>
    %cst_2 = arith.constant -1.000000e+00 : f32
    %10 = vector.broadcast %cst_2 : f32 to vector<9x9xf32>
    %11 = arith.addf %10, %9 : vector<9x9xf32>
    %c0 = arith.constant 0 : index
    %c0_3 = arith.constant 0 : index
    %c0_4 = arith.constant 0 : index
    %12 = memref.load %arg0[%c0, %c0_3, %c0_4] : memref<2x3x2xf32, #tpu.memory_space<smem>>
    %c0_5 = arith.constant 0 : index
    %c0_6 = arith.constant 0 : index
    %c1 = arith.constant 1 : index
    %13 = memref.load %arg0[%c0_5, %c0_6, %c1] : memref<2x3x2xf32, #tpu.memory_space<smem>>
    %c1_7 = arith.constant 1 : index
    %c0_8 = arith.constant 0 : index
    %c0_9 = arith.constant 0 : index
    %14 = memref.load %arg0[%c1_7, %c0_8, %c0_9] : memref<2x3x2xf32, #tpu.memory_space<smem>>
    %c1_10 = arith.constant 1 : index
    %c0_11 = arith.constant 0 : index
    %c1_12 = arith.constant 1 : index
    %15 = memref.load %arg0[%c1_10, %c0_11, %c1_12] : memref<2x3x2xf32, #tpu.memory_space<smem>>
    %cst_13 = arith.constant 2.000000e+00 : f32
    %16 = arith.mulf %cst_13, %14 : f32
    %17 = arith.mulf %16, %14 : f32
    %cst_14 = arith.constant -1.000000e+00 : f32
    %18 = arith.divf %cst_14, %17 : f32
    %cst_15 = arith.constant 2.000000e+00 : f32
    %19 = arith.mulf %cst_15, %15 : f32
    %20 = arith.mulf %19, %15 : f32
    %cst_16 = arith.constant -1.000000e+00 : f32
    %21 = arith.divf %cst_16, %20 : f32
    %22 = vector.broadcast %13 : f32 to vector<9x9xf32>
    %23 = arith.subf %11, %22 : vector<9x9xf32>
    %24 = arith.mulf %23, %23 : vector<9x9xf32>
    %25 = vector.broadcast %21 : f32 to vector<9x9xf32>
    %26 = arith.mulf %24, %25 : vector<9x9xf32>
    %27 = vector.broadcast %12 : f32 to vector<9x9xf32>
    %28 = arith.subf %7, %27 : vector<9x9xf32>
    %29 = arith.mulf %28, %28 : vector<9x9xf32>
    %30 = vector.broadcast %18 : f32 to vector<9x9xf32>
    %31 = arith.mulf %29, %30 : vector<9x9xf32>
    %32 = arith.addf %26, %31 : vector<9x9xf32>
    %33 = math.exp %32 : vector<9x9xf32>
    %34 = vector.shape_cast %33 : vector<9x9xf32> to vector<1x9x9xf32>
    %cst_17 = arith.constant dense<0.000000e+00> : vector<1xf32>
    %35 = vector.multi_reduction <add>, %34, %cst_17 [1, 2] : vector<1x9x9xf32> to vector<1xf32>
    %36 = vector.shape_cast %35 : vector<1xf32> to vector<1x1x1xf32>
    %37 = vector.extract %36[0, 0, 0] : f32 from vector<1x1x1xf32>
    %cst_18 = arith.constant 1.000000e+00 : f32
    %38 = arith.divf %cst_18, %37 : f32
    %39 = vector.broadcast %38 : f32 to vector<9x9xf32>
    %40 = arith.mulf %33, %39 : vector<9x9xf32>
    %c0_19 = arith.constant 0 : index
    %c0_20 = arith.constant 0 : index
    %c0_21 = arith.constant 0 : index
    %c0_22 = arith.constant 0 : index
    %41 = vector.load %arg1[%c0_19, %c0_20, %c0_21, %c0_22] : memref<3x1x9x9xf32, #tpu.memory_space<vmem>>, vector<1x1x9x9xf32>
    %42 = vector.shape_cast %41 : vector<1x1x9x9xf32> to vector<9x9xf32>
    %43 = vector.shape_cast %40 : vector<9x9xf32> to vector<1x1x9x9xf32>
    tpu.vector_store %arg1[%c0_19, %c0_20, %c0_21, %c0_22], %43 {strides = array<i32>} : memref<3x1x9x9xf32, #tpu.memory_space<vmem>>, vector<1x1x9x9xf32>,
    %c0_23 = arith.constant 0 : index
    %c1_24 = arith.constant 1 : index
    %c0_25 = arith.constant 0 : index
    %44 = memref.load %arg0[%c0_23, %c1_24, %c0_25] : memref<2x3x2xf32, #tpu.memory_space<smem>>
    %c0_26 = arith.constant 0 : index
    %c1_27 = arith.constant 1 : index
    %c1_28 = arith.constant 1 : index
    %45 = memref.load %arg0[%c0_26, %c1_27, %c1_28] : memref<2x3x2xf32, #tpu.memory_space<smem>>
    %c1_29 = arith.constant 1 : index
    %c1_30 = arith.constant 1 : index
    %c0_31 = arith.constant 0 : index
    %46 = memref.load %arg0[%c1_29, %c1_30, %c0_31] : memref<2x3x2xf32, #tpu.memory_space<smem>>
    %c1_32 = arith.constant 1 : index
    %c1_33 = arith.constant 1 : index
    %c1_34 = arith.constant 1 : index
    %47 = memref.load %arg0[%c1_32, %c1_33, %c1_34] : memref<2x3x2xf32, #tpu.memory_space<smem>>
    %cst_35 = arith.constant 2.000000e+00 : f32
    %48 = arith.mulf %cst_35, %46 : f32
    %49 = arith.mulf %48, %46 : f32
    %cst_36 = arith.constant -1.000000e+00 : f32
    %50 = arith.divf %cst_36, %49 : f32
    %cst_37 = arith.constant 2.000000e+00 : f32
    %51 = arith.mulf %cst_37, %47 : f32
    %52 = arith.mulf %51, %47 : f32
    %cst_38 = arith.constant -1.000000e+00 : f32
    %53 = arith.divf %cst_38, %52 : f32
    %54 = vector.broadcast %45 : f32 to vector<9x9xf32>
    %55 = arith.subf %11, %54 : vector<9x9xf32>
    %56 = arith.mulf %55, %55 : vector<9x9xf32>
    %57 = vector.broadcast %53 : f32 to vector<9x9xf32>
    %58 = arith.mulf %56, %57 : vector<9x9xf32>
    %59 = vector.broadcast %44 : f32 to vector<9x9xf32>
    %60 = arith.subf %7, %59 : vector<9x9xf32>
    %61 = arith.mulf %60, %60 : vector<9x9xf32>
    %62 = vector.broadcast %50 : f32 to vector<9x9xf32>
    %63 = arith.mulf %61, %62 : vector<9x9xf32>
    %64 = arith.addf %58, %63 : vector<9x9xf32>
    %65 = math.exp %64 : vector<9x9xf32>
    %66 = vector.shape_cast %65 : vector<9x9xf32> to vector<1x9x9xf32>
    %cst_39 = arith.constant dense<0.000000e+00> : vector<1xf32>
    %67 = vector.multi_reduction <add>, %66, %cst_39 [1, 2] : vector<1x9x9xf32> to vector<1xf32>
    %68 = vector.shape_cast %67 : vector<1xf32> to vector<1x1x1xf32>
    %69 = vector.extract %68[0, 0, 0] : f32 from vector<1x1x1xf32>
    %cst_40 = arith.constant 1.000000e+00 : f32
    %70 = arith.divf %cst_40, %69 : f32
    %71 = vector.broadcast %70 : f32 to vector<9x9xf32>
    %72 = arith.mulf %65, %71 : vector<9x9xf32>
    %c1_41 = arith.constant 1 : index
    %c0_42 = arith.constant 0 : index
    %c0_43 = arith.constant 0 : index
    %c0_44 = arith.constant 0 : index
    %73 = vector.load %arg1[%c1_41, %c0_42, %c0_43, %c0_44] : memref<3x1x9x9xf32, #tpu.memory_space<vmem>>, vector<1x1x9x9xf32>
    %74 = vector.shape_cast %73 : vector<1x1x9x9xf32> to vector<9x9xf32>
    %75 = vector.shape_cast %72 : vector<9x9xf32> to vector<1x1x9x9xf32>
    tpu.vector_store %arg1[%c1_41, %c0_42, %c0_43, %c0_44], %75 {strides = array<i32>} : memref<3x1x9x9xf32, #tpu.memory_space<vmem>>, vector<1x1x9x9xf32>,
    %c0_45 = arith.constant 0 : index
    %c2 = arith.constant 2 : index
    %c0_46 = arith.constant 0 : index
    %76 = memref.load %arg0[%c0_45, %c2, %c0_46] : memref<2x3x2xf32, #tpu.memory_space<smem>>
    %c0_47 = arith.constant 0 : index
    %c2_48 = arith.constant 2 : index
    %c1_49 = arith.constant 1 : index
    %77 = memref.load %arg0[%c0_47, %c2_48, %c1_49] : memref<2x3x2xf32, #tpu.memory_space<smem>>
    %c1_50 = arith.constant 1 : index
    %c2_51 = arith.constant 2 : index
    %c0_52 = arith.constant 0 : index
    %78 = memref.load %arg0[%c1_50, %c2_51, %c0_52] : memref<2x3x2xf32, #tpu.memory_space<smem>>
    %c1_53 = arith.constant 1 : index
    %c2_54 = arith.constant 2 : index
    %c1_55 = arith.constant 1 : index
    %79 = memref.load %arg0[%c1_53, %c2_54, %c1_55] : memref<2x3x2xf32, #tpu.memory_space<smem>>
    %cst_56 = arith.constant 2.000000e+00 : f32
    %80 = arith.mulf %cst_56, %78 : f32
    %81 = arith.mulf %80, %78 : f32
    %cst_57 = arith.constant -1.000000e+00 : f32
    %82 = arith.divf %cst_57, %81 : f32
    %cst_58 = arith.constant 2.000000e+00 : f32
    %83 = arith.mulf %cst_58, %79 : f32
    %84 = arith.mulf %83, %79 : f32
    %cst_59 = arith.constant -1.000000e+00 : f32
    %85 = arith.divf %cst_59, %84 : f32
    %86 = vector.broadcast %77 : f32 to vector<9x9xf32>
    %87 = arith.subf %11, %86 : vector<9x9xf32>
    %88 = arith.mulf %87, %87 : vector<9x9xf32>
    %89 = vector.broadcast %85 : f32 to vector<9x9xf32>
    %90 = arith.mulf %88, %89 : vector<9x9xf32>
    %91 = vector.broadcast %76 : f32 to vector<9x9xf32>
    %92 = arith.subf %7, %91 : vector<9x9xf32>
    %93 = arith.mulf %92, %92 : vector<9x9xf32>
    %94 = vector.broadcast %82 : f32 to vector<9x9xf32>
    %95 = arith.mulf %93, %94 : vector<9x9xf32>
    %96 = arith.addf %90, %95 : vector<9x9xf32>
    %97 = math.exp %96 : vector<9x9xf32>
    %98 = vector.shape_cast %97 : vector<9x9xf32> to vector<1x9x9xf32>
    %cst_60 = arith.constant dense<0.000000e+00> : vector<1xf32>
    %99 = vector.multi_reduction <add>, %98, %cst_60 [1, 2] : vector<1x9x9xf32> to vector<1xf32>
    %100 = vector.shape_cast %99 : vector<1xf32> to vector<1x1x1xf32>
    %101 = vector.extract %100[0, 0, 0] : f32 from vector<1x1x1xf32>
    %cst_61 = arith.constant 1.000000e+00 : f32
    %102 = arith.divf %cst_61, %101 : f32
    %103 = vector.broadcast %102 : f32 to vector<9x9xf32>
    %104 = arith.mulf %97, %103 : vector<9x9xf32>
    %c2_62 = arith.constant 2 : index
    %c0_63 = arith.constant 0 : index
    %c0_64 = arith.constant 0 : index
    %c0_65 = arith.constant 0 : index
    %105 = vector.load %arg1[%c2_62, %c0_63, %c0_64, %c0_65] : memref<3x1x9x9xf32, #tpu.memory_space<vmem>>, vector<1x1x9x9xf32>
    %106 = vector.shape_cast %105 : vector<1x1x9x9xf32> to vector<9x9xf32>
    %107 = vector.shape_cast %104 : vector<9x9xf32> to vector<1x1x9x9xf32>
    tpu.vector_store %arg1[%c2_62, %c0_63, %c0_64, %c0_65], %107 {strides = array<i32>} : memref<3x1x9x9xf32, #tpu.memory_space<vmem>>, vector<1x1x9x9xf32>,
    return
  }
}

</mosaic_0001>

<llo_original>
// kernel: tpu_custom_call.1
$region0: #{tpu_custom_call.1}
  #allocation0 [shape = 'u32[]', space=smem, size = 0x4, offset = 0x4, fixed_abs, tag = 'smem constant byte address 0x4 - core index']
  #allocation1 [shape = 'u32[144,128]{1,0:T(1,128)}', space=vmem, size = 0x12000, scoped, tag = 'internal scratch']
  %s0 = inlined_call_operand.vmem [shape: f32[2,3,2], index: 0, kind: input, shape index: {}]
  %s1 = inlined_call_operand.vmem [shape: f32[3,1,9,9], index: 1, kind: output, shape index: {}]
  %s2 = sld [smem:[#allocation0]]
  $region18: #{tpu_custom_call.1} parent=0
    _
  %s4 = ssub.s32 1, %s2
  %s5 = scalar_select 0, %s4, %s2
  $region1: #{tpu_custom_call.1} parent=0
    #allocation2 [shape = 'u8[4096]{0}', space=smem, size = 0x1000, scoped, tag = 'input window, operand 0, single buffered']
    #allocation3 [shape = 's32[1]{0}', space=sflag, size = 0x4, scoped, tag = 'scoped memory for tpu_custom_call.1']
    %6 = vsyncpa [#allocation3], 0
    // Predicated region
    $region2: #{tpu_custom_call.1} parent=1 // pred_check
      _
    $region3: #{tpu_custom_call.1} parent=1 // pred_check_branch
      %8 = sbr.rel (0) target = $region5
    $region4: #{tpu_custom_call.1} parent=1 // pred_region
      %s10 = ssub.s32 128, 128
      %11 = vsyncadd [#allocation3], %s10
      %s12 = sshll.u32 %s0, 4
      %s13 = int_to_ptr.vmem [resolvable:$true] %s12
      %18 = dma.vmem_to_smem %s13, 128, [#allocation2], [#allocation3], 64, 64, 4
    $region5: #{tpu_custom_call.1} parent=1 // pred_fallthru
      _
    // Predicated region
    $region6: #{tpu_custom_call.1} parent=1 // pred_check
      _
    $region7: #{tpu_custom_call.1} parent=1 // pred_check_branch
      %20 = sbr.rel (0) target = $region9
    $region8: #{tpu_custom_call.1} parent=1 // pred_region
      %21 = dma.done [#allocation3], 128
    $region9: #{tpu_custom_call.1} parent=1 // pred_fallthru
      _
    %22 = sfence
    %v23 = vlaneseq
    %v24 = vshrl.u32 %v23, 7
    %v25 = vadd.s32 %v24, 8
    %v26 = vcvt.s32.f32 %v24
    %v27 = vcvt.s32.f32 %v25
    %v28 = vlaneseq
    %v29 = vand.u32 %v28, 127
    %v30 = vcvt.s32.f32 %v29
    %v31 = vmul.f32 %v26, 0.25
    %v32 = vmul.f32 %v27, 0.25
    %v33 = vadd.f32 %v31, -1.0
    %v34 = vadd.f32 %v32, -1.0
    %v35 = vmul.f32 %v30, 0.25
    %v36 = vadd.f32 %v35, -1.0
    %s37 = sld [smem:[#allocation2]]
    %s38 = sld [smem:[#allocation2 + $0x1]]
    %s39 = sld [smem:[#allocation2 + $0x200]]
    %s40 = sld [smem:[#allocation2 + $0x201]]
    %s41 = smul.f32 %s39, 2.0
    %s42 = smul.f32 %s41, %s39
    %v43 = vstv %s42
    %v44 = vrcp.pop %v43
    %s45 = vtos %v44
    %s46 = smul.f32 -1.0, %s45
    %s47 = smul.f32 %s40, 2.0
    %s48 = smul.f32 %s47, %s40
    %v49 = vstv %s48
    %v50 = vrcp.pop %v49
    %s51 = vtos %v50
    %s52 = smul.f32 -1.0, %s51
    %v53 = vstv %s38
    %v54 = vsub.f32 %v36, %v53
    %v55 = vmul.f32 %v54, %v54
    %v56 = vstv %s52
    %v57 = vmul.f32 %v55, %v56
    %v58 = vstv %s37
    %v59 = vsub.f32 %v33, %v58
    %v60 = vsub.f32 %v34, %v58
    %v61 = vmul.f32 %v59, %v59
    %v62 = vmul.f32 %v60, %v60
    %v63 = vstv %s46
    %v64 = vmul.f32 %v61, %v63
    %v65 = vmul.f32 %v62, %v63
    %v66 = vadd.f32 %v57, %v64
    %v67 = vadd.f32 %v57, %v65
    %v68 = vmul.f32 %v66, 1.442695
    %v69 = vpow.pop %v68
    %v70 = vmul.f32 %v67, 1.442695
    %v71 = vpow.pop %v70
    %vm72 = vcmask 72704
    %v73 = vsel %vm72, %v69, 0.0
    %vm74 = vcmask 65536
    %v75 = vsel %vm74, %v71, 0.0
    %v76 = vadd.f32 %v73, %v75
    %77 = vadd.xlane.f32.xlu0 %v76
    %v78 = vpop.xlane.xlu0 %77
    %v79 = vrot.slane %v78, 4
    %v80 = vadd.f32 %v78, %v79
    %v81 = vrot.slane %v80, 2
    %v82 = vadd.f32 %v80, %v81
    %v83 = vrot.slane %v82, 1
    %v84 = vadd.f32 %v82, %v83
    %s85 = vtos %v84
    %v86 = vstv %s85
    %v87 = vrcp.pop %v86
    %s88 = vtos %v87
    %v89 = vstv %s88
    %v90 = vmul.f32 %v69, %v89
    %v91 = vmul.f32 %v71, %v89
    %92 = vst.msk [vmem:[%s1] sm:$0xff] %vm72, %v90
    %93 = vst.msk [vmem:[%s1 + $0x8] sm:$0x1] %vm74, %v91
    %s94 = sld [smem:[#allocation2 + $0x80]]
    %s95 = sld [smem:[#allocation2 + $0x81]]
    %s96 = sld [smem:[#allocation2 + $0x280]]
    %s97 = sld [smem:[#allocation2 + $0x281]]
    %s98 = smul.f32 %s96, 2.0
    %s99 = smul.f32 %s98, %s96
    %v100 = vstv %s99
    %v101 = vrcp.pop %v100
    %s102 = vtos %v101
    %s103 = smul.f32 -1.0, %s102
    %s104 = smul.f32 %s97, 2.0
    %s105 = smul.f32 %s104, %s97
    %v106 = vstv %s105
    %v107 = vrcp.pop %v106
    %s108 = vtos %v107
    %s109 = smul.f32 -1.0, %s108
    %v110 = vstv %s95
    %v111 = vsub.f32 %v36, %v110
    %v112 = vmul.f32 %v111, %v111
    %v113 = vstv %s109
    %v114 = vmul.f32 %v112, %v113
    %v115 = vstv %s94
    %v116 = vsub.f32 %v33, %v115
    %v117 = vsub.f32 %v34, %v115
    %v118 = vmul.f32 %v116, %v116
    %v119 = vmul.f32 %v117, %v117
    %v120 = vstv %s103
    %v121 = vmul.f32 %v118, %v120
    %v122 = vmul.f32 %v119, %v120
    %v123 = vadd.f32 %v114, %v121
    %v124 = vadd.f32 %v114, %v122
    %v125 = vmul.f32 %v123, 1.442695
    %v126 = vpow.pop %v125
    %v127 = vmul.f32 %v124, 1.442695
    %v128 = vpow.pop %v127
    %v129 = vsel %vm72, %v126, 0.0
    %v130 = vsel %vm74, %v128, 0.0
    %v131 = vadd.f32 %v129, %v130
    %132 = vadd.xlane.f32.xlu0 %v131
    %v133 = vpop.xlane.xlu0 %132
    %v134 = vrot.slane %v133, 4
    %v135 = vadd.f32 %v133, %v134
    %v136 = vrot.slane %v135, 2
    %v137 = vadd.f32 %v135, %v136
    %v138 = vrot.slane %v137, 1
    %v139 = vadd.f32 %v137, %v138
    %s140 = vtos %v139
    %v141 = vstv %s140
    %v142 = vrcp.pop %v141
    %s143 = vtos %v142
    %v144 = vstv %s143
    %v145 = vmul.f32 %v126, %v144
    %v146 = vmul.f32 %v128, %v144
    %s147 = scalar_lea.vmem %s1, 16
    %148 = vst.msk [vmem:[%s147] sm:$0xff] %vm72, %v145
    %149 = vst.msk [vmem:[%s147 + $0x8] sm:$0x1] %vm74, %v146
    %s150 = sld [smem:[#allocation2 + $0x100]]
    %s151 = sld [smem:[#allocation2 + $0x101]]
    %s152 = sld [smem:[#allocation2 + $0x300]]
    %s153 = sld [smem:[#allocation2 + $0x301]]
    %s154 = smul.f32 %s152, 2.0
    %s155 = smul.f32 %s154, %s152
    %v156 = vstv %s155
    %v157 = vrcp.pop %v156
    %s158 = vtos %v157
    %s159 = smul.f32 -1.0, %s158
    %s160 = smul.f32 %s153, 2.0
    %s161 = smul.f32 %s160, %s153
    %v162 = vstv %s161
    %v163 = vrcp.pop %v162
    %s164 = vtos %v163
    %s165 = smul.f32 -1.0, %s164
    %v166 = vstv %s151
    %v167 = vsub.f32 %v36, %v166
    %v168 = vmul.f32 %v167, %v167
    %v169 = vstv %s165
    %v170 = vmul.f32 %v168, %v169
    %v171 = vstv %s150
    %v172 = vsub.f32 %v33, %v171
    %v173 = vsub.f32 %v34, %v171
    %v174 = vmul.f32 %v172, %v172
    %v175 = vmul.f32 %v173, %v173
    %v176 = vstv %s159
    %v177 = vmul.f32 %v174, %v176
    %v178 = vmul.f32 %v175, %v176
    %v179 = vadd.f32 %v170, %v177
    %v180 = vadd.f32 %v170, %v178
    %v181 = vmul.f32 %v179, 1.442695
    %v182 = vpow.pop %v181
    %v183 = vmul.f32 %v180, 1.442695
    %v184 = vpow.pop %v183
    %v185 = vsel %vm72, %v182, 0.0
    %v186 = vsel %vm74, %v184, 0.0
    %v187 = vadd.f32 %v185, %v186
    %188 = vadd.xlane.f32.xlu0 %v187
    %v189 = vpop.xlane.xlu0 %188
    %v190 = vrot.slane %v189, 4
    %v191 = vadd.f32 %v189, %v190
    %v192 = vrot.slane %v191, 2
    %v193 = vadd.f32 %v191, %v192
    %v194 = vrot.slane %v193, 1
    %v195 = vadd.f32 %v193, %v194
    %s196 = vtos %v195
    %v197 = vstv %s196
    %v198 = vrcp.pop %v197
    %s199 = vtos %v198
    %v200 = vstv %s199
    %v201 = vmul.f32 %v182, %v200
    %v202 = vmul.f32 %v184, %v200
    %s203 = scalar_lea.vmem %s1, 32
    %204 = vst.msk [vmem:[%s203] sm:$0xff] %vm72, %v201
    %205 = vst.msk [vmem:[%s203 + $0x8] sm:$0x1] %vm74, %v202
    // Predicated region
    $region10: #{tpu_custom_call.1} parent=1 // pred_check
      _
    $region11: #{tpu_custom_call.1} parent=1 // pred_check_branch
      %207 = sbr.rel (0) target = $region13
    $region12: #{tpu_custom_call.1} parent=1 // pred_region
      _
    $region13: #{tpu_custom_call.1} parent=1 // pred_fallthru
      _
    // Predicated region
    $region14: #{tpu_custom_call.1} parent=1 // pred_check
      _
    $region15: #{tpu_custom_call.1} parent=1 // pred_check_branch
      %209 = sbr.rel (0) target = $region17
    $region16: #{tpu_custom_call.1} parent=1 // pred_region
      _
    $region17: #{tpu_custom_call.1} parent=1 // pred_fallthru
      _
    %210 = vsyncpa [#allocation3], 1

</llo_original>
